<compile_context>
chip_gen: v7x
topology: tpu7x:2x2x1
jax: 0.10.0
libtpu: 0.0.40
codegen_flags: <defaults>
</compile_context>

<pallas_src>
import functools

import jax
import jax.numpy as jnp
from jax.experimental import pallas as pl
from jax.experimental.pallas import tpu as pltpu


def _logit_norm_loss_kernel(logits_ref, labels_ref, out_ref, *,
                            temperature, eps, smoothing, n_total, block_rows,
                            use_max_shift):
    i = pl.program_id(0)

    x = logits_ref[...].astype(jnp.float32)            # (TN, C), f32 math in VMEM
    tn, c = x.shape
    labels = labels_ref[...]                            # (TN, 1) int32

    # --- Row statistics (XLU cross-lane reductions over the class axis).
    sum_x = jnp.sum(x, axis=1, keepdims=True)           # (TN, 1)
    sum_x2 = jnp.sum(x * x, axis=1, keepdims=True)       # (TN, 1)

    # Smoothed-target term without materializing the (TN, C) weight matrix:
    #   sum_c w_c * x_c = (s/C) * sum_c x_c + (1-s) * x_{label}
    col = jax.lax.broadcasted_iota(jnp.int32, (tn, c), 1)
    x_label = jnp.sum(jnp.where(col == labels, x, 0.0), axis=1, keepdims=True)
    wsum_x = (smoothing / c) * sum_x + (1.0 - smoothing) * x_label   # (TN, 1)

    # --- Normalization: one reciprocal per row instead of C divides per row.
    denom = (jnp.sqrt(sum_x2) + eps) * temperature       # (TN, 1), > 0
    inv = pl.reciprocal(denom, approx=False)              # exact; only TN elems/tile

    z = x * inv                                            # (TN, C)
    if use_max_shift:
        # Extreme temperature: keep the numerically-shifted logsumexp.
        max_x = jnp.max(x, axis=1, keepdims=True)
        m = max_x * inv                                    # = max(z) since inv > 0
        lse = m + jnp.log(jnp.sum(jnp.exp(z - m), axis=1, keepdims=True))
    else:
        # |z_c| <= 1/temperature < 80, so exp(z) cannot overflow in f32.
        lse = jnp.log(jnp.sum(jnp.exp(z), axis=1, keepdims=True))

    # Smoothed cross entropy per row:  lse - sum_c w_c * z_c
    per_row = lse - wsum_x * inv                           # (TN, 1)

    # --- Mask rows of the (possibly partial) last tile that fall past N.
    row = jax.lax.broadcasted_iota(jnp.int32, (tn, 1), 0) + i * block_rows
    per_row = jnp.where(row < n_total, per_row, 0.0)

    # Per-tile partial sum, broadcast into a lane-dense (1, 8, 128) output block.
    out_ref[...] = jnp.full(out_ref.shape, jnp.sum(per_row), dtype=jnp.float32)


def _pick_block_rows(n, c, requested=None, target_tile_bytes=8 << 20):
    """Batch-tile picker.

    Sized by the *f32* compute footprint (the kernel upcasts bf16 in VMEM and
    creates f32 temporaries), so the double-buffered input tiles plus the f32
    elementwise temporaries stay comfortably under a 48 MiB VMEM budget.
    Keeps num_tiles >= 2 when N allows it so the parallel grid axis can be
    sharded across both v7x TensorCores.
    """
    if requested is not None:
        tn = int(requested)
    else:
        tn = max(8, target_tile_bytes // max(1, c * 4))   # f32 footprint, no row cap
    tn = min(tn, n)
    if requested is None and n > 8:
        # Ensure at least two grid steps (megacore sharding on v7x).
        half = -(-n // 2)                  # cdiv(n, 2)
        half = ((half + 7) // 8) * 8
        tn = min(tn, half)
    if tn != n:
        # block's second-to-last dim must be a multiple of 8 (or equal the full dim)
        tn = max(8, (tn // 8) * 8)
        tn = min(tn, n)
    return tn


def logit_norm_loss(logits, labels, *, temperature, eps=0.0014, smoothing=0.2,
                    block_rows=None):
    """logits: [N, C] float (f32 or bf16), labels: [N] int -> scalar f32 mean loss."""
    n, c = logits.shape
    labels2d = labels.astype(jnp.int32).reshape(n, 1)

    tn = _pick_block_rows(n, c, requested=block_rows)
    num_tiles = pl.cdiv(n, tn)

    # Static gate: |z_c| <= 1/temperature, so the unshifted exp is safe whenever
    # 1/temperature stays well below f32's ~88.7 exp-overflow threshold.
    use_max_shift = (1.0 / float(temperature)) >= 80.0

    kernel = functools.partial(
        _logit_norm_loss_kernel,
        temperature=float(temperature),
        eps=float(eps),
        smoothing=float(smoothing),
        n_total=n,
        block_rows=tn,
        use_max_shift=use_max_shift,
    )

    partials = pl.pallas_call(
        kernel,
        out_shape=jax.ShapeDtypeStruct((num_tiles, 8, 128), jnp.float32),
        grid_spec=pltpu.PrefetchScalarGridSpec(
            num_scalar_prefetch=0,
            grid=(num_tiles,),
            in_specs=[
                pl.BlockSpec((tn, c), lambda i: (i, 0)),   # batch tile of logits
                pl.BlockSpec((tn, 1), lambda i: (i, 0)),   # matching label tile
            ],
            out_specs=pl.BlockSpec((1, 8, 128), lambda i: (i, 0, 0)),
        ),
        compiler_params=pltpu.CompilerParams(
            dimension_semantics=("parallel",),             # both TCs on v7x
            vmem_limit_bytes=48 * 1024 * 1024,             # > v5e/v6e defaults, < v7x 64 MiB
        ),
    )(logits, labels2d)

    # Final mean reduction over the (few) per-tile partial sums, in plain JAX.
    # TODO(synk): for N >= ~1e7 rows use pairwise/f64 summation of the partials.
    return jnp.sum(partials[:, 0, 0]) / n


def _reference(logits, labels, *, temperature, eps, smoothing):
    # Pure-JAX reference of the PyTorch forward, for a sanity check.
    x = logits.astype(jnp.float32)
    n, c = x.shape
    norm = jnp.linalg.norm(x, axis=1, keepdims=True)
    z = x / ((norm + eps) * temperature)
    logp = jax.nn.log_softmax(z, axis=1)
    onehot = jax.nn.one_hot(labels, c, dtype=jnp.float32)
    target = (1.0 - smoothing) * onehot + smoothing / c
    return jnp.mean(-jnp.sum(target * logp, axis=1))


if __name__ == "__main__":
    key = jax.random.PRNGKey(0)
    k1, k2 = jax.random.split(key)

    # Small GNN-style node-classification shapes; N deliberately NOT a multiple
    # of the tile so the remainder-masking path is exercised.
    N, C = 50, 32
    temperature = 0.5          # 1/T = 2 < 80 -> unshifted-logsumexp fast path
    eps = 0.0014
    smoothing = 0.2

    logits = jax.random.normal(k1, (N, C), dtype=jnp.float32)
    labels = jax.random.randint(k2, (N,), 0, C, dtype=jnp.int32)

    # f32 path, auto-picked tile (2 tiles of 32 rows -> remainder masking + megacore).
    loss = logit_norm_loss(logits, labels, temperature=temperature,
                           eps=eps, smoothing=smoothing)
    loss = jax.block_until_ready(loss)
    ref = _reference(logits, labels, temperature=temperature,
                     eps=eps, smoothing=smoothing)
    assert jnp.allclose(loss, ref, atol=1e-5, rtol=1e-5), (loss, ref)

    # bf16 input path (kernel upcasts in VMEM; halves HBM read traffic).
    logits_bf16 = logits.astype(jnp.bfloat16)
    loss_bf16 = logit_norm_loss(logits_bf16, labels, temperature=temperature,
                                eps=eps, smoothing=smoothing, block_rows=16)
    loss_bf16 = jax.block_until_ready(loss_bf16)
    ref_bf16 = _reference(logits_bf16.astype(jnp.float32), labels,
                          temperature=temperature, eps=eps, smoothing=smoothing)
    assert jnp.allclose(loss_bf16, ref_bf16, atol=1e-4, rtol=1e-4), (loss_bf16, ref_bf16)

    # Extreme-temperature path (1/T >= 80) exercises the max-shifted logsumexp gate.
    temp_lo = 0.01
    loss_lo = logit_norm_loss(logits, labels, temperature=temp_lo,
                              eps=eps, smoothing=smoothing, block_rows=16)
    loss_lo = jax.block_until_ready(loss_lo)
    ref_lo = _reference(logits, labels, temperature=temp_lo,
                        eps=eps, smoothing=smoothing)
    assert jnp.allclose(loss_lo, ref_lo, atol=1e-4, rtol=1e-4), (loss_lo, ref_lo)

    print("KERNEL_OK")
</pallas_src>

<mosaic_0001>
module attributes {stable_mosaic.version = 11 : i64} {
  func.func @_logit_norm_loss_kernel(%arg0: i32, %arg1: memref<32x32xf32, #tpu.memory_space<vmem>>, %arg2: memref<32x1xi32, #tpu.memory_space<vmem>>, %arg3: memref<1x8x128xf32, #tpu.memory_space<vmem>>) attributes {dimension_semantics = [#tpu.dimension_semantics<parallel>], iteration_bounds = array<i64: 2>, scalar_prefetch = 0 : i64, scratch_operands = 0 : i64, tpu.core_type = #tpu.core_type<tc>, window_params = [{transform_indices = @transform_0, window_bounds = array<i64: 32, 32>}, {transform_indices = @transform_1, window_bounds = array<i64: 32, 1>}, {transform_indices = @transform_2, window_bounds = array<i64: 1, 8, 128>}]} {
    %c0 = arith.constant 0 : index
    %c0_0 = arith.constant 0 : index
    %0 = vector.load %arg1[%c0, %c0_0] : memref<32x32xf32, #tpu.memory_space<vmem>>, vector<32x32xf32>
    %c0_1 = arith.constant 0 : index
    %c0_2 = arith.constant 0 : index
    %1 = vector.load %arg2[%c0_1, %c0_2] : memref<32x1xi32, #tpu.memory_space<vmem>>, vector<32x1xi32>
    %cst = arith.constant dense<0.000000e+00> : vector<32xf32>
    %2 = vector.multi_reduction <add>, %0, %cst [1] : vector<32x32xf32> to vector<32xf32>
    %3 = vector.shape_cast %2 : vector<32xf32> to vector<32x1xf32>
    %4 = arith.mulf %0, %0 : vector<32x32xf32>
    %cst_3 = arith.constant dense<0.000000e+00> : vector<32xf32>
    %5 = vector.multi_reduction <add>, %4, %cst_3 [1] : vector<32x32xf32> to vector<32xf32>
    %6 = vector.shape_cast %5 : vector<32xf32> to vector<32x1xf32>
    %7 = tpu.iota {dimensions = array<i32: 1>} : vector<32x32xi32>
    %8 = vector.broadcast %1 : vector<32x1xi32> to vector<32x32xi32>
    %9 = arith.cmpi eq, %7, %8 : vector<32x32xi32>
    %cst_4 = arith.constant 0.000000e+00 : f32
    %10 = vector.broadcast %cst_4 : f32 to vector<32x32xf32>
    %11 = arith.select %9, %0, %10 : vector<32x32xi1>, vector<32x32xf32>
    %cst_5 = arith.constant dense<0.000000e+00> : vector<32xf32>
    %12 = vector.multi_reduction <add>, %11, %cst_5 [1] : vector<32x32xf32> to vector<32xf32>
    %13 = vector.shape_cast %12 : vector<32xf32> to vector<32x1xf32>
    %cst_6 = arith.constant 6.250000e-03 : f32
    %14 = vector.broadcast %cst_6 : f32 to vector<32x1xf32>
    %15 = arith.mulf %14, %3 : vector<32x1xf32>
    %cst_7 = arith.constant 8.000000e-01 : f32
    %16 = vector.broadcast %cst_7 : f32 to vector<32x1xf32>
    %17 = arith.mulf %16, %13 : vector<32x1xf32>
    %18 = arith.addf %15, %17 : vector<32x1xf32>
    %19 = math.sqrt %6 : vector<32x1xf32>
    %cst_8 = arith.constant 1.400000e-03 : f32
    %20 = vector.broadcast %cst_8 : f32 to vector<32x1xf32>
    %21 = arith.addf %19, %20 : vector<32x1xf32>
    %cst_9 = arith.constant 5.000000e-01 : f32
    %22 = vector.broadcast %cst_9 : f32 to vector<32x1xf32>
    %23 = arith.mulf %21, %22 : vector<32x1xf32>
    %24 = tpu.reciprocal %23 : vector<32x1xf32> -> vector<32x1xf32>
    %25 = vector.broadcast %24 : vector<32x1xf32> to vector<32x32xf32>
    %26 = arith.mulf %0, %25 : vector<32x32xf32>
    %27 = math.exp %26 : vector<32x32xf32>
    %cst_10 = arith.constant dense<0.000000e+00> : vector<32xf32>
    %28 = vector.multi_reduction <add>, %27, %cst_10 [1] : vector<32x32xf32> to vector<32xf32>
    %29 = vector.shape_cast %28 : vector<32xf32> to vector<32x1xf32>
    %30 = math.log %29 : vector<32x1xf32>
    %31 = arith.mulf %18, %24 : vector<32x1xf32>
    %32 = arith.subf %30, %31 : vector<32x1xf32>
    %33 = tpu.iota {dimensions = array<i32: 0>} : vector<32x1xi32>
    %c32_i32 = arith.constant 32 : i32
    %34 = arith.muli %arg0, %c32_i32 : i32
    %35 = vector.broadcast %34 : i32 to vector<32x1xi32>
    %36 = arith.addi %33, %35 : vector<32x1xi32>
    %c50_i32 = arith.constant 50 : i32
    %37 = vector.broadcast %c50_i32 : i32 to vector<32x1xi32>
    %38 = arith.cmpi slt, %36, %37 : vector<32x1xi32>
    %cst_11 = arith.constant 0.000000e+00 : f32
    %39 = vector.broadcast %cst_11 : f32 to vector<32x1xf32>
    %40 = arith.select %38, %32, %39 : vector<32x1xi1>, vector<32x1xf32>
    %41 = vector.shape_cast %40 : vector<32x1xf32> to vector<1x32x1xf32>
    %cst_12 = arith.constant dense<0.000000e+00> : vector<1xf32>
    %42 = vector.multi_reduction <add>, %41, %cst_12 [1, 2] : vector<1x32x1xf32> to vector<1xf32>
    %43 = vector.shape_cast %42 : vector<1xf32> to vector<1x1x1xf32>
    %44 = vector.extract %43[0, 0, 0] : f32 from vector<1x1x1xf32>
    %45 = vector.broadcast %44 : f32 to vector<1x8x128xf32>
    %c0_13 = arith.constant 0 : index
    %c0_14 = arith.constant 0 : index
    %c0_15 = arith.constant 0 : index
    %46 = vector.load %arg3[%c0_13, %c0_14, %c0_15] : memref<1x8x128xf32, #tpu.memory_space<vmem>>, vector<1x8x128xf32>
    tpu.vector_store %arg3[%c0_13, %c0_14, %c0_15], %45 {strides = array<i32>} : memref<1x8x128xf32, #tpu.memory_space<vmem>>, vector<1x8x128xf32>,
    return
  }
  func.func @transform_0(%arg0: i32) -> (i32, i32) {
    %c0_i32 = arith.constant 0 : i32
    %c0_i32_0 = arith.constant 0 : i32
    return %arg0, %c0_i32 : i32, i32
  }
  func.func @transform_1(%arg0: i32) -> (i32, i32) {
    %c0_i32 = arith.constant 0 : i32
    %c0_i32_0 = arith.constant 0 : i32
    return %arg0, %c0_i32 : i32, i32
  }
  func.func @transform_2(%arg0: i32) -> (i32, i32, i32) {
    %c0_i32 = arith.constant 0 : i32
    %c0_i32_0 = arith.constant 0 : i32
    %c0_i32_1 = arith.constant 0 : i32
    return %arg0, %c0_i32, %c0_i32_0 : i32, i32, i32
  }
}

</mosaic_0001>

<llo_original>
// kernel: tpu_custom_call.1
$region0: #{tpu_custom_call.1}
  #allocation0 [shape = 'u32[]', space=smem, size = 0x4, offset = 0x4, fixed_abs, tag = 'smem constant byte address 0x4 - core index']
  #allocation1 [shape = 'u32[144,128]{1,0:T(1,128)}', space=vmem, size = 0x12000, scoped, tag = 'internal scratch']
  %s0 = inlined_call_operand.vmem [shape: f32[50,32], index: 0, kind: input, shape index: {}]
  %s1 = inlined_call_operand.vmem [shape: s32[50,1], index: 1, kind: input, shape index: {}]
  %s2 = inlined_call_operand.hbm [shape: f32[2,8,128], index: 2, kind: output, shape index: {}]
  %s3 = sld [smem:[#allocation0]]
  $region41: #{tpu_custom_call.1} parent=0
    _
  %s5 = ssub.s32 1, %s3
  %s6 = scalar_select 0, %s5, %s3
  $region1: #{tpu_custom_call.1} parent=0
    #allocation2 [shape = 'u8[8192]{0}', space=vmem, size = 0x2000, scoped, tag = 'output window, operand 0']
    #allocation3 [shape = 's32[2]{0}', space=sflag, size = 0x8, scoped, tag = 'scoped memory for tpu_custom_call.1']
    %7 = vsyncpa [#allocation3], 0
    %s8 = scalar_lea.sflag [#allocation3], 1
    %9 = vsyncpa %s8, 0
    loop: start=0, step=1, limit=4
    $region2: #{tpu_custom_call.1} parent=1 // loop_pre_header
      _
    $region3: #{tpu_custom_call.1} parent=1 // loop_header
      %s11 = sphi 0, %s15
      %p12 = scmp.ge.s32.totalorder %s11, 4
      %s21 = sphi 0, %s23
      %s24 = sphi 0, %s21
      %s25 = sphi 0, %s24
      %s41 = sphi 0, %s25
      %s47 = sphi 0, %s49
      %s50 = sphi 0, %s47
      %s51 = sphi 0, %s50
      %s67 = sphi 0, %s51
      %s73 = sphi 0, %s75
      %s76 = sphi 0, %s73
      %s77 = sphi 0, %s76
      %s93 = sphi 0, %s77
    $region4: #{tpu_custom_call.1} parent=1 // loop_header_branch
      %14 = sbr.rel (%p12) target = $region8
    $region5: #{tpu_custom_call.1} parent=1 // loop_body
      %s16 = ssub.s32 %s11, 1
      %s17 = ssub.s32 %s11, 2
      %s18 = sadd.s32 %s11, 1
      %s19 = ssub.s32 %s11, %s18
      %p20 = scmp.eq.s32.totalorder %s19, 0
      %s22 = sadd.s32 %s21, 1
      %s23 = scalar_select %p20, %s21, %s22
      %p26 = pneg %p20
      %p27 = scmp.eq.s32.totalorder %s11, 1
      %p28 = por %p26, %p27
      %p29 = scmp.ne.s32.totalorder %s21, %s24
      %p30 = scmp.eq.s32.totalorder %s11, 0
      %p31 = por %p29, %p30
      %p32 = scmp.ne.s32.totalorder %s21, %s24
      %p33 = scmp.eq.s32.totalorder %s16, 1
      %p34 = por %p32, %p33
      %p35 = scmp.ne.s32.totalorder %s24, %s25
      %p36 = scmp.eq.s32.totalorder %s16, 0
      %p37 = por %p35, %p36
      %p38 = scmp.ne.s32.totalorder %s24, %s25
      %p39 = scmp.eq.s32.totalorder %s17, 1
      %p40 = por %p38, %p39
      %p42 = scmp.ne.s32.totalorder %s25, %s41
      %p43 = scmp.eq.s32.totalorder %s17, 0
      %p44 = por %p42, %p43
      %s45 = ssub.s32 %s11, %s18
      %p46 = scmp.eq.s32.totalorder %s45, 0
      %s48 = sadd.s32 %s47, 1
      %s49 = scalar_select %p46, %s47, %s48
      %p52 = pneg %p46
      %p53 = scmp.eq.s32.totalorder %s11, 1
      %p54 = por %p52, %p53
      %p55 = scmp.ne.s32.totalorder %s47, %s50
      %p56 = scmp.eq.s32.totalorder %s11, 0
      %p57 = por %p55, %p56
      %p58 = scmp.ne.s32.totalorder %s47, %s50
      %p59 = scmp.eq.s32.totalorder %s16, 1
      %p60 = por %p58, %p59
      %p61 = scmp.ne.s32.totalorder %s50, %s51
      %p62 = scmp.eq.s32.totalorder %s16, 0
      %p63 = por %p61, %p62
      %p64 = scmp.ne.s32.totalorder %s50, %s51
      %p65 = scmp.eq.s32.totalorder %s17, 1
      %p66 = por %p64, %p65
      %p68 = scmp.ne.s32.totalorder %s51, %s67
      %p69 = scmp.eq.s32.totalorder %s17, 0
      %p70 = por %p68, %p69
      %s71 = ssub.s32 %s11, %s18
      %p72 = scmp.eq.s32.totalorder %s71, 0
      %s74 = sadd.s32 %s73, 1
      %s75 = scalar_select %p72, %s73, %s74
      %p78 = pneg %p72
      %p79 = scmp.eq.s32.totalorder %s11, 1
      %p80 = por %p78, %p79
      %p81 = scmp.ne.s32.totalorder %s73, %s76
      %p82 = scmp.eq.s32.totalorder %s11, 0
      %p83 = por %p81, %p82
      %p84 = scmp.ne.s32.totalorder %s73, %s76
      %p85 = scmp.eq.s32.totalorder %s16, 1
      %p86 = por %p84, %p85
      %p87 = scmp.ne.s32.totalorder %s76, %s77
      %p88 = scmp.eq.s32.totalorder %s16, 0
      %p89 = por %p87, %p88
      %p90 = scmp.ne.s32.totalorder %s76, %s77
      %p91 = scmp.eq.s32.totalorder %s17, 1
      %p92 = por %p90, %p91
      %p94 = scmp.ne.s32.totalorder %s77, %s93
      %p95 = scmp.eq.s32.totalorder %s17, 0
      %p96 = por %p94, %p95
      %p97 = scmp.le.s32.totalorder 1, %s11
      %p98 = scmp.lt.s32.totalorder %s11, 3
      %p99 = pnand %p97, %p98
      %p100 = pneg %p99
      // Predicated region
      $region9: #{tpu_custom_call.1} parent=5 // pred_check
        _
      $region10: #{tpu_custom_call.1} parent=5 // pred_check_branch
        %102 = sbr.rel (%p99) target = $region12
      $region11: #{tpu_custom_call.1} parent=5 // pred_region
        %s103 = ssub.s32 %s11, 1
      $region12: #{tpu_custom_call.1} parent=5 // pred_fallthru
        _
      %p104 = scmp.lt.s32.totalorder %s11, 2
      // Predicated region
      $region13: #{tpu_custom_call.1} parent=5 // pred_check
        %p105 = pneg %p104
      $region14: #{tpu_custom_call.1} parent=5 // pred_check_branch
        %107 = sbr.rel (%p105) target = $region16
      $region15: #{tpu_custom_call.1} parent=5 // pred_region
        // Predicated region
        $region17: #{tpu_custom_call.1} parent=15 // pred_check
          %p108 = pneg %p31
        $region18: #{tpu_custom_call.1} parent=15 // pred_check_branch
          %110 = sbr.rel (%p108) target = $region20
        $region19: #{tpu_custom_call.1} parent=15 // pred_region
          %s111 = smul.u32 4, %s11
          %s112 = ssub.s32 7, %s111
          %p113 = scmp.lt.s32.totalorder %s112, 4
          %s114 = scalar_select %p113, %s112, 4
          %s115 = smul.u32 128, %s114
          %p116 = scmp.lt.s32.totalorder %s111, 6
          %s117 = scalar_select %p116, %s111, 6
          %s118 = smul.addr %s117, 8
          %s119 = scalar_lea.vmem %s0, %s118
          %s120 = smul.u32 4, %s11
          %s121 = ssub.s32 7, %s120
          %p122 = scmp.lt.s32.totalorder %s121, 4
          %s123 = scalar_select %p122, %s121, 4
          %s124 = smul.u32 128, %s123
        $region20: #{tpu_custom_call.1} parent=15 // pred_fallthru
          _
        // Predicated region
        $region21: #{tpu_custom_call.1} parent=15 // pred_check
          %p125 = pneg %p57
        $region22: #{tpu_custom_call.1} parent=15 // pred_check_branch
          %127 = sbr.rel (%p125) target = $region24
        $region23: #{tpu_custom_call.1} parent=15 // pred_region
          %s128 = smul.u32 4, %s11
          %s129 = ssub.s32 7, %s128
          %p130 = scmp.lt.s32.totalorder %s129, 4
          %s131 = scalar_select %p130, %s129, 4
          %s132 = smul.u32 128, %s131
          %p133 = scmp.lt.s32.totalorder %s128, 6
          %s134 = scalar_select %p133, %s128, 6
          %s135 = smul.addr %s134, 8
          %s136 = scalar_lea.vmem %s1, %s135
          %s137 = smul.u32 4, %s11
          %s138 = ssub.s32 7, %s137
          %p139 = scmp.lt.s32.totalorder %s138, 4
          %s140 = scalar_select %p139, %s138, 4
          %s141 = smul.u32 128, %s140
        $region24: #{tpu_custom_call.1} parent=15 // pred_fallthru
          _
      $region16: #{tpu_custom_call.1} parent=5 // pred_fallthru
        _
      %p142 = scmp.le.s32.totalorder 1, %s11
      %p143 = scmp.lt.s32.totalorder %s11, 3
      %p144 = pnand %p142, %p143
      %p145 = pneg %p144
      // Predicated region
      $region25: #{tpu_custom_call.1} parent=5 // pred_check
        _
      $region26: #{tpu_custom_call.1} parent=5 // pred_check_branch
        %147 = sbr.rel (%p144) target = $region28
      $region27: #{tpu_custom_call.1} parent=5 // pred_region
        %s148 = ssub.s32 %s11, 1
        %s149 = smul.u32 4, %s16
        %s150 = ssub.s32 7, %s149
        %p151 = scmp.lt.s32.totalorder %s150, 4
        %s152 = scalar_select %p151, %s150, 4
        %s153 = smul.u32 128, %s152
        %p154 = scmp.lt.s32.totalorder %s149, 6
        %s155 = scalar_select %p154, %s149, 6
        %s156 = smul.addr %s155, 8
        %s157 = scalar_lea.vmem %s0, %s156
        %p158 = pneg %p37
        %p159 = pneg %p34
        %s160 = smul.u32 4, %s16
        %s161 = ssub.s32 7, %s160
        %p162 = scmp.lt.s32.totalorder %s161, 4
        %s163 = scalar_select %p162, %s161, 4
        %s164 = smul.u32 128, %s163
        %p165 = scmp.lt.s32.totalorder %s160, 6
        %s166 = scalar_select %p165, %s160, 6
        %s167 = smul.addr %s166, 8
        %s168 = scalar_lea.vmem %s1, %s167
        %p169 = pneg %p63
        %p170 = pneg %p60
        %p171 = pneg %p89
        %p172 = pneg %p86
        %s173 = sand.u32 %s76, 1
        %s174 = scalar_lea.sflag [#allocation3], %s173
        %s175 = sand.u32 %s76, 1
        %s176 = smul.addr %s175, 8
        %s177 = scalar_lea.vmem [#allocation2], %s176
        %s178 = smul.u32 4, %s16
        %s179 = ssub.s32 7, %s178
        %p180 = scmp.lt.s32.totalorder %s179, 4
        %s181 = scalar_select %p180, %s179, 4
        %s182 = smul.u32 128, %s181
        %p183 = scmp.lt.s32.totalorder %s178, 6
        %s184 = scalar_select %p183, %s178, 6
        %s185 = smul.addr %s184, 8
        %s186 = scalar_lea.vmem %s0, %s185
        %s187 = smul.u32 4, %s16
        %s188 = ssub.s32 7, %s187
        %p189 = scmp.lt.s32.totalorder %s188, 4
        %s190 = scalar_select %p189, %s188, 4
        %s191 = smul.u32 128, %s190
        %s192 = smul.u32 4, %s16
        %s193 = ssub.s32 7, %s192
        %p194 = scmp.lt.s32.totalorder %s193, 4
        %s195 = scalar_select %p194, %s193, 4
        %s196 = smul.u32 128, %s195
        %p197 = scmp.lt.s32.totalorder %s192, 6
        %s198 = scalar_select %p197, %s192, 6
        %s199 = smul.addr %s198, 8
        %s200 = scalar_lea.vmem %s1, %s199
        %s201 = smul.u32 4, %s16
        %s202 = ssub.s32 7, %s201
        %p203 = scmp.lt.s32.totalorder %s202, 4
        %s204 = scalar_select %p203, %s202, 4
        %s205 = smul.u32 128, %s204
        %v206 = vld [vmem:[%s186] sm:$0xff]
        %v207 = vld [vmem:[%s186 + $0x8] sm:$0xff]
        %v208 = vld [vmem:[%s186 + $0x10] sm:$0xff]
        %v209 = vld [vmem:[%s186 + $0x18] sm:$0xff]
        %v210 = vld [vmem:[%s200] sm:$0xff]
        %v211 = vld [vmem:[%s200 + $0x8] sm:$0xff]
        %v212 = vld [vmem:[%s200 + $0x10] sm:$0xff]
        %v213 = vld [vmem:[%s200 + $0x18] sm:$0xff]
        %vm214 = vcmask 261120
        %v215 = vsel %vm214, %v206, 0.0
        %216 = vadd.xlane.f32.xlu0 %v215
        %v217 = vpop.xlane.xlu0 %216
        %v218 = vsel %vm214, %v207, 0.0
        %219 = vadd.xlane.f32.xlu0 %v218
        %v220 = vpop.xlane.xlu0 %219
        %v221 = vsel %vm214, %v208, 0.0
        %222 = vadd.xlane.f32.xlu0 %v221
        %v223 = vpop.xlane.xlu0 %222
        %v224 = vsel %vm214, %v209, 0.0
        %225 = vadd.xlane.f32.xlu0 %v224
        %v226 = vpop.xlane.xlu0 %225
        %v227 = vmul.f32 %v206, %v206
        %v228 = vmul.f32 %v207, %v207
        %v229 = vmul.f32 %v208, %v208
        %v230 = vmul.f32 %v209, %v209
        %v231 = vsel %vm214, %v227, 0.0
        %232 = vadd.xlane.f32.xlu0 %v231
        %v233 = vpop.xlane.xlu0 %232
        %v234 = vsel %vm214, %v228, 0.0
        %235 = vadd.xlane.f32.xlu0 %v234
        %v236 = vpop.xlane.xlu0 %235
        %v237 = vsel %vm214, %v229, 0.0
        %238 = vadd.xlane.f32.xlu0 %v237
        %v239 = vpop.xlane.xlu0 %238
        %v240 = vsel %vm214, %v230, 0.0
        %241 = vadd.xlane.f32.xlu0 %v240
        %v242 = vpop.xlane.xlu0 %241
        %v243 = vlaneseq
        %v244 = vand.u32 %v243, 127
        %245 = vset.pattern.permute.xlu0 0
        %246 = vperm.xlu0 %245, %v210
        %v247 = vpop.permute.xlu0 %246
        %248 = vset.pattern.permute.xlu0 0
        %249 = vperm.xlu0 %248, %v211
        %v250 = vpop.permute.xlu0 %249
        %251 = vset.pattern.permute.xlu0 0
        %252 = vperm.xlu0 %251, %v212
        %v253 = vpop.permute.xlu0 %252
        %254 = vset.pattern.permute.xlu0 0
        %255 = vperm.xlu0 %254, %v213
        %v256 = vpop.permute.xlu0 %255
        %vm257 = vcmp.eq.s32.totalorder %v244, %v247
        %vm258 = vcmp.eq.s32.totalorder %v244, %v250
        %vm259 = vcmp.eq.s32.totalorder %v244, %v253
        %vm260 = vcmp.eq.s32.totalorder %v244, %v256
        %v261 = vsel %vm257, %v206, 0.0
        %v262 = vsel %vm258, %v207, 0.0
        %v263 = vsel %vm259, %v208, 0.0
        %v264 = vsel %vm260, %v209, 0.0
        %v265 = vsel %vm214, %v261, 0.0
        %266 = vadd.xlane.f32.xlu0 %v265
        %v267 = vpop.xlane.xlu0 %266
        %v268 = vsel %vm214, %v262, 0.0
        %269 = vadd.xlane.f32.xlu0 %v268
        %v270 = vpop.xlane.xlu0 %269
        %v271 = vsel %vm214, %v263, 0.0
        %272 = vadd.xlane.f32.xlu0 %v271
        %v273 = vpop.xlane.xlu0 %272
        %v274 = vsel %vm214, %v264, 0.0
        %275 = vadd.xlane.f32.xlu0 %v274
        %v276 = vpop.xlane.xlu0 %275
        %v277 = vmul.f32 %v217, 0.00625
        %v278 = vmul.f32 %v220, 0.00625
        %v279 = vmul.f32 %v223, 0.00625
        %v280 = vmul.f32 %v226, 0.00625
        %v281 = vmul.f32 %v267, 0.8
        %v282 = vmul.f32 %v270, 0.8
        %v283 = vmul.f32 %v273, 0.8
        %v284 = vmul.f32 %v276, 0.8
        %v285 = vadd.f32 %v277, %v281
        %v286 = vadd.f32 %v278, %v282
        %v287 = vadd.f32 %v279, %v283
        %v288 = vadd.f32 %v280, %v284
        %v289 = vrsqrt.pop %v233
        %v290 = vmul.f32 %v233, %v289
        %vm291 = vcmp.eq.f32.partialorder %v233, inf
        %v292 = vsel %vm291, %v233, %v290
        %vm293 = vcmp.eq.f32.partialorder %v233, 0.0
        %v294 = vand.u32 %v233, 2147483648
        %v295 = vsel %vm293, %v294, %v292
        %v296 = vrsqrt.pop %v236
        %v297 = vmul.f32 %v236, %v296
        %vm298 = vcmp.eq.f32.partialorder %v236, inf
        %v299 = vsel %vm298, %v236, %v297
        %vm300 = vcmp.eq.f32.partialorder %v236, 0.0
        %v301 = vand.u32 %v236, 2147483648
        %v302 = vsel %vm300, %v301, %v299
        %v303 = vrsqrt.pop %v239
        %v304 = vmul.f32 %v239, %v303
        %vm305 = vcmp.eq.f32.partialorder %v239, inf
        %v306 = vsel %vm305, %v239, %v304
        %vm307 = vcmp.eq.f32.partialorder %v239, 0.0
        %v308 = vand.u32 %v239, 2147483648
        %v309 = vsel %vm307, %v308, %v306
        %v310 = vrsqrt.pop %v242
        %v311 = vmul.f32 %v242, %v310
        %vm312 = vcmp.eq.f32.partialorder %v242, inf
        %v313 = vsel %vm312, %v242, %v311
        %vm314 = vcmp.eq.f32.partialorder %v242, 0.0
        %v315 = vand.u32 %v242, 2147483648
        %v316 = vsel %vm314, %v315, %v313
        %v317 = vadd.f32 %v295, 0.0014
        %v318 = vadd.f32 %v302, 0.0014
        %v319 = vadd.f32 %v309, 0.0014
        %v320 = vadd.f32 %v316, 0.0014
        %v321 = vmul.f32 %v317, 0.5
        %v322 = vmul.f32 %v318, 0.5
        %v323 = vmul.f32 %v319, 0.5
        %v324 = vmul.f32 %v320, 0.5
        %v325 = vrcp.pop %v321
        %v326 = vrcp.pop %v322
        %v327 = vrcp.pop %v323
        %v328 = vrcp.pop %v324
        %v329 = vmul.f32 %v206, %v325
        %v330 = vmul.f32 %v207, %v326
        %v331 = vmul.f32 %v208, %v327
        %v332 = vmul.f32 %v209, %v328
        %v333 = vmul.f32 %v329, 1.442695
        %v334 = vpow.pop %v333
        %v335 = vmul.f32 %v330, 1.442695
        %v336 = vpow.pop %v335
        %v337 = vmul.f32 %v331, 1.442695
        %v338 = vpow.pop %v337
        %v339 = vmul.f32 %v332, 1.442695
        %v340 = vpow.pop %v339
        %v341 = vsel %vm214, %v334, 0.0
        %342 = vadd.xlane.f32.xlu0 %v341
        %v343 = vpop.xlane.xlu0 %342
        %v344 = vsel %vm214, %v336, 0.0
        %345 = vadd.xlane.f32.xlu0 %v344
        %v346 = vpop.xlane.xlu0 %345
        %v347 = vsel %vm214, %v338, 0.0
        %348 = vadd.xlane.f32.xlu0 %v347
        %v349 = vpop.xlane.xlu0 %348
        %v350 = vsel %vm214, %v340, 0.0
        %351 = vadd.xlane.f32.xlu0 %v350
        %v352 = vpop.xlane.xlu0 %351
        %v353 = vlog2.pop %v343
        %v354 = vmul.f32 %v353, 0.6931472
        %v355 = vlog2.pop %v346
        %v356 = vmul.f32 %v355, 0.6931472
        %v357 = vlog2.pop %v349
        %v358 = vmul.f32 %v357, 0.6931472
        %v359 = vlog2.pop %v352
        %v360 = vmul.f32 %v359, 0.6931472
        %v361 = vmul.f32 %v285, %v325
        %v362 = vmul.f32 %v286, %v326
        %v363 = vmul.f32 %v287, %v327
        %v364 = vmul.f32 %v288, %v328
        %v365 = vsub.f32 %v354, %v361
        %v366 = vsub.f32 %v356, %v362
        %v367 = vsub.f32 %v358, %v363
        %v368 = vsub.f32 %v360, %v364
        %v369 = vlaneseq
        %v370 = vshrl.u32 %v369, 7
        %v371 = vadd.s32 %v370, 8
        %v372 = vadd.s32 %v370, 16
        %v373 = vadd.s32 %v370, 24
        %s374 = smul.u32 %s16, 32
        %v375 = vstv %s374
        %v376 = vadd.s32 %v370, %v375
        %v377 = vadd.s32 %v371, %v375
        %v378 = vadd.s32 %v372, %v375
        %v379 = vadd.s32 %v373, %v375
        %vm380 = vcmp.lt.s32.totalorder %v376, 50
        %vm381 = vcmp.lt.s32.totalorder %v377, 50
        %vm382 = vcmp.lt.s32.totalorder %v378, 50
        %vm383 = vcmp.lt.s32.totalorder %v379, 50
        %v384 = vsel %vm380, %v365, 0.0
        %v385 = vsel %vm381, %v366, 0.0
        %v386 = vsel %vm382, %v367, 0.0
        %v387 = vsel %vm383, %v368, 0.0
        %vm388 = vcmask 7168
        %v389 = vsel %vm388, %v384, 0.0
        %v390 = vsel %vm388, %v385, 0.0
        %v391 = vadd.f32 %v389, %v390
        %v392 = vsel %vm388, %v386, 0.0
        %v393 = vadd.f32 %v391, %v392
        %v394 = vsel %vm388, %v387, 0.0
        %v395 = vadd.f32 %v393, %v394
        %396 = vadd.xlane.f32.xlu0 %v395
        %v397 = vpop.xlane.xlu0 %396
        %v398 = vrot.slane %v397, 4
        %v399 = vadd.f32 %v397, %v398
        %v400 = vrot.slane %v399, 2
        %v401 = vadd.f32 %v399, %v400
        %v402 = vrot.slane %v401, 1
        %v403 = vadd.f32 %v401, %v402
        %s404 = vtos %v403
        %v405 = vstv %s404
        %406 = vst [vmem:[%s177] sm:$0xff] %v405
        %s407 = sand.u32 %s76, 1
        %s408 = scalar_lea.sflag [#allocation3], %s407
        %s409 = sand.u32 %s76, 1
        %s410 = smul.addr %s409, 8
        %s411 = scalar_lea.vmem [#allocation2], %s410
        // Predicated region
        $region29: #{tpu_custom_call.1} parent=27 // pred_check
          %p412 = pneg %p86
        $region30: #{tpu_custom_call.1} parent=27 // pred_check_branch
          %414 = sbr.rel (%p412) target = $region32
        $region31: #{tpu_custom_call.1} parent=27 // pred_region
          %s416 = ssub.s32 128, 128
          %417 = vsyncadd %s408, %s416
          %s418 = smul.addr %s16, 128
          %s419 = scalar_lea.hbm %s2, %s418
          %s421 = sshll.u32 %s411, 4
          %s422 = int_to_ptr.vmem [resolvable:$true] %s421
          %424 = dma.vmem_to_hbm [thread:$0]  %s422, 128, %s419, %s408
        $region32: #{tpu_custom_call.1} parent=27 // pred_fallthru
          _
      $region28: #{tpu_custom_call.1} parent=5 // pred_fallthru
        _
      %p425 = scmp.le.s32.totalorder 2, %s11
      // Predicated region
      $region33: #{tpu_custom_call.1} parent=5 // pred_check
        %p426 = pneg %p425
      $region34: #{tpu_custom_call.1} parent=5 // pred_check_branch
        %428 = sbr.rel (%p426) target = $region36
      $region35: #{tpu_custom_call.1} parent=5 // pred_region
        %s429 = ssub.s32 %s11, 2
        // Predicated region
        $region37: #{tpu_custom_call.1} parent=35 // pred_check
          %p430 = pneg %p92
        $region38: #{tpu_custom_call.1} parent=35 // pred_check_branch
          %432 = sbr.rel (%p430) target = $region40
        $region39: #{tpu_custom_call.1} parent=35 // pred_region
          %s433 = sand.u32 %s77, 1
          %s434 = scalar_lea.sflag [#allocation3], %s433
          %s435 = sand.u32 %s77, 1
          %s436 = smul.addr %s435, 8
          %s437 = scalar_lea.vmem [#allocation2], %s436
          %438 = dma.done %s434, 128
        $region40: #{tpu_custom_call.1} parent=35 // pred_fallthru
          _
      $region36: #{tpu_custom_call.1} parent=5 // pred_fallthru
        _
    $region6: #{tpu_custom_call.1} parent=1 // loop_footer
      %s15 = sadd.s32 1, %s11
    $region7: #{tpu_custom_call.1} parent=1 // loop_footer_branch
      %10 = sbr.rel target = $region3
    $region8: #{tpu_custom_call.1} parent=1 // loop_exit
      _
    %439 = vsyncpa [#allocation3], 1
    %s440 = scalar_lea.sflag [#allocation3], 1
    %441 = vsyncpa %s440, 1

</llo_original>
